<compile_context>
chip_gen: v7x
topology: tpu7x:2x2x1
jax: 0.10.0
libtpu: 0.0.40
codegen_flags: <defaults>
</compile_context>

<pallas_src>
import functools

import jax
import jax.numpy as jnp
from jax.experimental import pallas as pl
from jax.experimental.pallas import tpu as pltpu


def _lstm_kernel(x_ref, wih_ref, whh_ref, b_ref, wfc_ref, bfc_ref, out_ref,
                 *, seq_len):
    # x_ref:   (TB*T, D) f32   batch-first rows, row index = b*T + t
    # wih_ref: (D, 4H)   bf16  input->gates weight, gate cols [i, f, o, g]
    # whh_ref: (H, 4H)   bf16  hidden->gates weight, gate cols [i, f, o, g]
    # b_ref:   (1, 4H)   f32   b_ih + b_hh combined, gate cols [i, f, o, g]
    # wfc_ref: (H, O)    bf16  fc weight (transposed)
    # bfc_ref: (1, O)    f32   fc bias
    # out_ref: (TB, O)   f32   fc(h_T) for this batch block
    T = seq_len
    TB = x_ref.shape[0] // T
    H = whh_ref.shape[0]
    G = 4 * H

    whh = whh_ref[...]                       # hoisted: loaded once, reused every step

    # ---- Hoisted input projection (one big MXU matmul, bias folded in). ----
    # Cast to bf16 on the VPU here (wrapper passes f32 -> halves HBM traffic).
    xb = x_ref[...].astype(jnp.bfloat16)                                   # (TB*T, D)
    xw = jnp.dot(xb, wih_ref[...],
                 preferred_element_type=jnp.float32) + b_ref[...]          # (TB*T, 4H) f32

    # One-time relayout to time-major: per-step read xw[t] is then a
    # contiguous sublane-aligned (TB, 4H) slab (no per-step strided gather).
    xw = jnp.transpose(xw.reshape(TB, T, G), (1, 0, 2))                    # (T, TB, 4H)

    h = jnp.zeros((TB, H), jnp.float32)
    c = jnp.zeros((TB, H), jnp.float32)

    # ---- Fully unrolled recurrence: only h @ W_hh is on the serial chain. ----
    for t in range(T):
        gates = xw[t] + jnp.dot(h.astype(jnp.bfloat16), whh,
                                preferred_element_type=jnp.float32)        # (TB, 4H) f32
        # Gate columns are pre-permuted to [i, f, o, g]:
        #   sigmoid over one contiguous 3H slab (via 0.5*tanh(x/2)+0.5, one
        #   EUP push), tanh over the trailing H slab.
        sig = 0.5 * jnp.tanh(0.5 * gates[:, :3 * H]) + 0.5
        g_g = jnp.tanh(gates[:, 3 * H:])
        i_g = sig[:, 0 * H:1 * H]            # static lane slices (cheap)
        f_g = sig[:, 1 * H:2 * H]
        o_g = sig[:, 2 * H:3 * H]
        c = f_g * c + i_g * g_g
        h = o_g * jnp.tanh(c)

    # ---- fc head on the final hidden state. ----
    out_ref[...] = (
        jnp.dot(h.astype(jnp.bfloat16), wfc_ref[...],
                preferred_element_type=jnp.float32)
        + bfc_ref[...]
    )


def _permute_ifgo_to_ifog(w, H):
    """Reorder the gate axis (size 4H, PyTorch order [i,f,g,o]) to [i,f,o,g]."""
    return jnp.concatenate([w[:2 * H], w[3 * H:4 * H], w[2 * H:3 * H]], axis=0)


def _choose_tb(B, T, D, H):
    """Batch-block size. Multiple of 8 whenever tb < B; >=2 programs only when
    the batch is big enough to feed v7x's two TensorCores; single program
    otherwise (v5e/v6e: grid is a serial loop, extra steps are pure overhead)."""
    tb = B
    if B >= 16 and (B // 2) % 8 == 0:
        tb = B // 2

    # VMEM budget guard (v7x: 64 MiB physical / 32 MiB scoped default):
    # xw f32 temp + double-buffered f32 x block + resident bf16 weights.
    def vmem_bytes(tb_):
        return (tb_ * T * 4 * H * 4
                + 2 * tb_ * T * D * 4
                + (D + H) * 4 * H * 2)

    while (vmem_bytes(tb) > 24 * 1024 * 1024
           and tb % 16 == 0 and B % (tb // 2) == 0):
        tb //= 2
    return tb


@jax.jit
def lstm_model_forward(x, w_ih, w_hh, b_ih, b_hh, w_fc, b_fc):
    """x: (B, T, D) float32 (PyTorch batch_first layout). Returns (B, O) float32."""
    B, T, D = x.shape
    H = w_hh.shape[1]
    G = 4 * H
    O = w_fc.shape[0]

    # Glue (all cheap / layout-only).  NOTE: x stays f32 (cast happens in-kernel).
    x2 = x.reshape(B * T, D)                                           # free reshape
    wih_t = jnp.transpose(_permute_ifgo_to_ifog(w_ih, H)).astype(jnp.bfloat16)   # (D, 4H)
    whh_t = jnp.transpose(_permute_ifgo_to_ifog(w_hh, H)).astype(jnp.bfloat16)   # (H, 4H)
    b = _permute_ifgo_to_ifog(b_ih + b_hh, H).reshape(1, G).astype(jnp.float32)  # (1, 4H)
    wfc_t = jnp.transpose(w_fc).astype(jnp.bfloat16)                             # (H, O)
    bfc = b_fc.reshape(1, O).astype(jnp.float32)                                 # (1, O)

    tb = _choose_tb(B, T, D, H)
    grid = (B // tb,)

    kernel = functools.partial(_lstm_kernel, seq_len=T)
    return pl.pallas_call(
        kernel,
        out_shape=jax.ShapeDtypeStruct((B, O), jnp.float32),
        grid=grid,
        in_specs=[
            pl.BlockSpec((tb * T, D), lambda i: (i, 0)),    # per-block rows of x
            pl.BlockSpec((D, G), lambda i: (0, 0)),          # weights: same block
            pl.BlockSpec((H, G), lambda i: (0, 0)),          #   every grid step →
            pl.BlockSpec((1, G), lambda i: (0, 0)),          #   stay VMEM-resident
            pl.BlockSpec((H, O), lambda i: (0, 0)),
            pl.BlockSpec((1, O), lambda i: (0, 0)),
        ],
        out_specs=pl.BlockSpec((tb, O), lambda i: (i, 0)),
        compiler_params=pltpu.CompilerParams(
            dimension_semantics=("parallel",)),
    )(x2, wih_t, whh_t, b, wfc_t, bfc)


def _reference_forward(x, w_ih, w_hh, b_ih, b_hh, w_fc, b_fc):
    """Plain-JAX reference matching torch.nn.LSTM + Linear semantics.

    Mirrors the kernel's precision choice (bf16 matmul operands, f32
    accumulation and element-wise math) so the comparison is tight.
    Uses PyTorch's native [i, f, g, o] gate order (no permutation).
    """
    B, T, D = x.shape
    H = w_hh.shape[1]
    xb = x.astype(jnp.bfloat16)
    wih = jnp.transpose(w_ih).astype(jnp.bfloat16)
    whh = jnp.transpose(w_hh).astype(jnp.bfloat16)
    wfc = jnp.transpose(w_fc).astype(jnp.bfloat16)
    b = (b_ih + b_hh)[None, :].astype(jnp.float32)
    h = jnp.zeros((B, H), jnp.float32)
    c = jnp.zeros((B, H), jnp.float32)
    for t in range(T):
        gates = (
            jnp.dot(xb[:, t, :], wih, preferred_element_type=jnp.float32)
            + jnp.dot(h.astype(jnp.bfloat16), whh, preferred_element_type=jnp.float32)
            + b
        )
        i_g = jax.nn.sigmoid(gates[:, 0 * H:1 * H])
        f_g = jax.nn.sigmoid(gates[:, 1 * H:2 * H])
        g_g = jnp.tanh(gates[:, 2 * H:3 * H])
        o_g = jax.nn.sigmoid(gates[:, 3 * H:4 * H])
        c = f_g * c + i_g * g_g
        h = o_g * jnp.tanh(c)
    return (jnp.dot(h.astype(jnp.bfloat16), wfc, preferred_element_type=jnp.float32)
            + b_fc[None, :].astype(jnp.float32))


if __name__ == "__main__":
    # Small shapes consistent with LSTMModel(input_dim=8, hidden_dim=32, output_dim=4)
    B, T, D, H, O = 2, 8, 8, 32, 4

    key = jax.random.PRNGKey(0)
    k = jax.random.split(key, 7)
    bound = 1.0 / (H ** 0.5)  # PyTorch default uniform init range

    w_ih = jax.random.uniform(k[0], (4 * H, D), jnp.float32, -bound, bound)
    w_hh = jax.random.uniform(k[1], (4 * H, H), jnp.float32, -bound, bound)
    b_ih = jax.random.uniform(k[2], (4 * H,), jnp.float32, -bound, bound)
    b_hh = jax.random.uniform(k[3], (4 * H,), jnp.float32, -bound, bound)
    w_fc = jax.random.uniform(k[4], (O, H), jnp.float32, -bound, bound)
    b_fc = jax.random.uniform(k[5], (O,), jnp.float32, -bound, bound)

    x = jax.random.normal(k[6], (B, T, D), jnp.float32)

    out = lstm_model_forward(x, w_ih, w_hh, b_ih, b_hh, w_fc, b_fc)
    out = jax.block_until_ready(out)

    ref = _reference_forward(x, w_ih, w_hh, b_ih, b_hh, w_fc, b_fc)
    assert out.shape == (B, O)
    assert jnp.allclose(out, ref, atol=1e-3, rtol=1e-3), (
        f"mismatch vs reference: max abs diff = {jnp.max(jnp.abs(out - ref))}")

    print("KERNEL_OK")
</pallas_src>

<mosaic_0001>
module attributes {stable_mosaic.version = 11 : i64} {
  func.func @_lstm_kernel(%arg0: i32, %arg1: memref<16x8xf32, #tpu.memory_space<vmem>>, %arg2: memref<8x128xbf16, #tpu.memory_space<vmem>>, %arg3: memref<32x128xbf16, #tpu.memory_space<vmem>>, %arg4: memref<1x128xf32, #tpu.memory_space<vmem>>, %arg5: memref<32x4xbf16, #tpu.memory_space<vmem>>, %arg6: memref<1x4xf32, #tpu.memory_space<vmem>>, %arg7: memref<2x4xf32, #tpu.memory_space<vmem>>) attributes {dimension_semantics = [#tpu.dimension_semantics<parallel>], iteration_bounds = array<i64: 1>, scalar_prefetch = 0 : i64, scratch_operands = 0 : i64, tpu.core_type = #tpu.core_type<tc>, window_params = [{transform_indices = @transform_0, window_bounds = array<i64: 16, 8>}, {pipeline_mode = #tpu.pipeline_mode<synchronous>, transform_indices = @transform_1, window_bounds = array<i64: 8, 128>}, {pipeline_mode = #tpu.pipeline_mode<synchronous>, transform_indices = @transform_2, window_bounds = array<i64: 32, 128>}, {pipeline_mode = #tpu.pipeline_mode<synchronous>, transform_indices = @transform_3, window_bounds = array<i64: 1, 128>}, {pipeline_mode = #tpu.pipeline_mode<synchronous>, transform_indices = @transform_4, window_bounds = array<i64: 32, 4>}, {pipeline_mode = #tpu.pipeline_mode<synchronous>, transform_indices = @transform_5, window_bounds = array<i64: 1, 4>}, {transform_indices = @transform_6, window_bounds = array<i64: 2, 4>}]} {
    %c0 = arith.constant 0 : index
    %c0_0 = arith.constant 0 : index
    %0 = vector.load %arg3[%c0, %c0_0] : memref<32x128xbf16, #tpu.memory_space<vmem>>, vector<32x128xbf16>
    %c0_1 = arith.constant 0 : index
    %c0_2 = arith.constant 0 : index
    %1 = vector.load %arg1[%c0_1, %c0_2] : memref<16x8xf32, #tpu.memory_space<vmem>>, vector<16x8xf32>
    %2 = arith.truncf %1 : vector<16x8xf32> to vector<16x8xbf16>
    %c0_3 = arith.constant 0 : index
    %c0_4 = arith.constant 0 : index
    %3 = vector.load %arg2[%c0_3, %c0_4] : memref<8x128xbf16, #tpu.memory_space<vmem>>, vector<8x128xbf16>
    %cst = arith.constant dense<0.000000e+00> : vector<16x128xf32>
    %4 = tpu.matmul %2, %3, %cst {dimension_numbers = #tpu.dot_dimension_numbers<[1], [0], [0], [1], [0, 0, 1, 1], [], []>} : vector<16x8xbf16>, vector<8x128xbf16>, vector<16x128xf32> -> vector<16x128xf32>
    %c0_5 = arith.constant 0 : index
    %c0_6 = arith.constant 0 : index
    %5 = vector.load %arg4[%c0_5, %c0_6] : memref<1x128xf32, #tpu.memory_space<vmem>>, vector<1x128xf32>
    %6 = vector.broadcast %5 : vector<1x128xf32> to vector<16x128xf32>
    %7 = arith.addf %4, %6 : vector<16x128xf32>
    %8 = vector.shape_cast %7 : vector<16x128xf32> to vector<2x8x128xf32>
    %9 = tpu.transpose %8, [1, 0, 2] : vector<2x8x128xf32> -> vector<8x2x128xf32>
    %cst_7 = arith.constant 0.000000e+00 : f32
    %10 = vector.broadcast %cst_7 : f32 to vector<2x32xf32>
    %cst_8 = arith.constant 0.000000e+00 : f32
    %11 = vector.broadcast %cst_8 : f32 to vector<2x32xf32>
    %12 = vector.extract_strided_slice %9 {offsets = [0, 0, 0], sizes = [1, 2, 128], strides = [1, 1, 1]} : vector<8x2x128xf32> to vector<1x2x128xf32>
    %13 = vector.shape_cast %12 : vector<1x2x128xf32> to vector<2x128xf32>
    %14 = arith.truncf %10 : vector<2x32xf32> to vector<2x32xbf16>
    %cst_9 = arith.constant dense<0.000000e+00> : vector<2x128xf32>
    %15 = tpu.matmul %14, %0, %cst_9 {dimension_numbers = #tpu.dot_dimension_numbers<[1], [0], [0], [1], [0, 0, 1, 1], [], []>} : vector<2x32xbf16>, vector<32x128xbf16>, vector<2x128xf32> -> vector<2x128xf32>
    %16 = arith.addf %13, %15 : vector<2x128xf32>
    %17 = vector.extract_strided_slice %16 {offsets = [0, 0], sizes = [2, 96], strides = [1, 1]} : vector<2x128xf32> to vector<2x96xf32>
    %cst_10 = arith.constant 5.000000e-01 : f32
    %18 = vector.broadcast %cst_10 : f32 to vector<2x96xf32>
    %19 = arith.mulf %18, %17 : vector<2x96xf32>
    %20 = math.tanh %19 : vector<2x96xf32>
    %cst_11 = arith.constant 5.000000e-01 : f32
    %21 = vector.broadcast %cst_11 : f32 to vector<2x96xf32>
    %22 = arith.mulf %21, %20 : vector<2x96xf32>
    %cst_12 = arith.constant 5.000000e-01 : f32
    %23 = vector.broadcast %cst_12 : f32 to vector<2x96xf32>
    %24 = arith.addf %22, %23 : vector<2x96xf32>
    %25 = vector.extract_strided_slice %16 {offsets = [0, 96], sizes = [2, 32], strides = [1, 1]} : vector<2x128xf32> to vector<2x32xf32>
    %26 = math.tanh %25 : vector<2x32xf32>
    %27 = vector.extract_strided_slice %24 {offsets = [0, 0], sizes = [2, 32], strides = [1, 1]} : vector<2x96xf32> to vector<2x32xf32>
    %28 = vector.extract_strided_slice %24 {offsets = [0, 32], sizes = [2, 32], strides = [1, 1]} : vector<2x96xf32> to vector<2x32xf32>
    %29 = vector.extract_strided_slice %24 {offsets = [0, 64], sizes = [2, 32], strides = [1, 1]} : vector<2x96xf32> to vector<2x32xf32>
    %30 = arith.mulf %28, %11 : vector<2x32xf32>
    %31 = arith.mulf %27, %26 : vector<2x32xf32>
    %32 = arith.addf %30, %31 : vector<2x32xf32>
    %33 = math.tanh %32 : vector<2x32xf32>
    %34 = arith.mulf %29, %33 : vector<2x32xf32>
    %35 = vector.extract_strided_slice %9 {offsets = [1, 0, 0], sizes = [1, 2, 128], strides = [1, 1, 1]} : vector<8x2x128xf32> to vector<1x2x128xf32>
    %36 = vector.shape_cast %35 : vector<1x2x128xf32> to vector<2x128xf32>
    %37 = arith.truncf %34 : vector<2x32xf32> to vector<2x32xbf16>
    %cst_13 = arith.constant dense<0.000000e+00> : vector<2x128xf32>
    %38 = tpu.matmul %37, %0, %cst_13 {dimension_numbers = #tpu.dot_dimension_numbers<[1], [0], [0], [1], [0, 0, 1, 1], [], []>} : vector<2x32xbf16>, vector<32x128xbf16>, vector<2x128xf32> -> vector<2x128xf32>
    %39 = arith.addf %36, %38 : vector<2x128xf32>
    %40 = vector.extract_strided_slice %39 {offsets = [0, 0], sizes = [2, 96], strides = [1, 1]} : vector<2x128xf32> to vector<2x96xf32>
    %cst_14 = arith.constant 5.000000e-01 : f32
    %41 = vector.broadcast %cst_14 : f32 to vector<2x96xf32>
    %42 = arith.mulf %41, %40 : vector<2x96xf32>
    %43 = math.tanh %42 : vector<2x96xf32>
    %cst_15 = arith.constant 5.000000e-01 : f32
    %44 = vector.broadcast %cst_15 : f32 to vector<2x96xf32>
    %45 = arith.mulf %44, %43 : vector<2x96xf32>
    %cst_16 = arith.constant 5.000000e-01 : f32
    %46 = vector.broadcast %cst_16 : f32 to vector<2x96xf32>
    %47 = arith.addf %45, %46 : vector<2x96xf32>
    %48 = vector.extract_strided_slice %39 {offsets = [0, 96], sizes = [2, 32], strides = [1, 1]} : vector<2x128xf32> to vector<2x32xf32>
    %49 = math.tanh %48 : vector<2x32xf32>
    %50 = vector.extract_strided_slice %47 {offsets = [0, 0], sizes = [2, 32], strides = [1, 1]} : vector<2x96xf32> to vector<2x32xf32>
    %51 = vector.extract_strided_slice %47 {offsets = [0, 32], sizes = [2, 32], strides = [1, 1]} : vector<2x96xf32> to vector<2x32xf32>
    %52 = vector.extract_strided_slice %47 {offsets = [0, 64], sizes = [2, 32], strides = [1, 1]} : vector<2x96xf32> to vector<2x32xf32>
    %53 = arith.mulf %51, %32 : vector<2x32xf32>
    %54 = arith.mulf %50, %49 : vector<2x32xf32>
    %55 = arith.addf %53, %54 : vector<2x32xf32>
    %56 = math.tanh %55 : vector<2x32xf32>
    %57 = arith.mulf %52, %56 : vector<2x32xf32>
    %58 = vector.extract_strided_slice %9 {offsets = [2, 0, 0], sizes = [1, 2, 128], strides = [1, 1, 1]} : vector<8x2x128xf32> to vector<1x2x128xf32>
    %59 = vector.shape_cast %58 : vector<1x2x128xf32> to vector<2x128xf32>
    %60 = arith.truncf %57 : vector<2x32xf32> to vector<2x32xbf16>
    %cst_17 = arith.constant dense<0.000000e+00> : vector<2x128xf32>
    %61 = tpu.matmul %60, %0, %cst_17 {dimension_numbers = #tpu.dot_dimension_numbers<[1], [0], [0], [1], [0, 0, 1, 1], [], []>} : vector<2x32xbf16>, vector<32x128xbf16>, vector<2x128xf32> -> vector<2x128xf32>
    %62 = arith.addf %59, %61 : vector<2x128xf32>
    %63 = vector.extract_strided_slice %62 {offsets = [0, 0], sizes = [2, 96], strides = [1, 1]} : vector<2x128xf32> to vector<2x96xf32>
    %cst_18 = arith.constant 5.000000e-01 : f32
    %64 = vector.broadcast %cst_18 : f32 to vector<2x96xf32>
    %65 = arith.mulf %64, %63 : vector<2x96xf32>
    %66 = math.tanh %65 : vector<2x96xf32>
    %cst_19 = arith.constant 5.000000e-01 : f32
    %67 = vector.broadcast %cst_19 : f32 to vector<2x96xf32>
    %68 = arith.mulf %67, %66 : vector<2x96xf32>
    %cst_20 = arith.constant 5.000000e-01 : f32
    %69 = vector.broadcast %cst_20 : f32 to vector<2x96xf32>
    %70 = arith.addf %68, %69 : vector<2x96xf32>
    %71 = vector.extract_strided_slice %62 {offsets = [0, 96], sizes = [2, 32], strides = [1, 1]} : vector<2x128xf32> to vector<2x32xf32>
    %72 = math.tanh %71 : vector<2x32xf32>
    %73 = vector.extract_strided_slice %70 {offsets = [0, 0], sizes = [2, 32], strides = [1, 1]} : vector<2x96xf32> to vector<2x32xf32>
    %74 = vector.extract_strided_slice %70 {offsets = [0, 32], sizes = [2, 32], strides = [1, 1]} : vector<2x96xf32> to vector<2x32xf32>
    %75 = vector.extract_strided_slice %70 {offsets = [0, 64], sizes = [2, 32], strides = [1, 1]} : vector<2x96xf32> to vector<2x32xf32>
    %76 = arith.mulf %74, %55 : vector<2x32xf32>
    %77 = arith.mulf %73, %72 : vector<2x32xf32>
    %78 = arith.addf %76, %77 : vector<2x32xf32>
    %79 = math.tanh %78 : vector<2x32xf32>
    %80 = arith.mulf %75, %79 : vector<2x32xf32>
    %81 = vector.extract_strided_slice %9 {offsets = [3, 0, 0], sizes = [1, 2, 128], strides = [1, 1, 1]} : vector<8x2x128xf32> to vector<1x2x128xf32>
    %82 = vector.shape_cast %81 : vector<1x2x128xf32> to vector<2x128xf32>
    %83 = arith.truncf %80 : vector<2x32xf32> to vector<2x32xbf16>
    %cst_21 = arith.constant dense<0.000000e+00> : vector<2x128xf32>
    %84 = tpu.matmul %83, %0, %cst_21 {dimension_numbers = #tpu.dot_dimension_numbers<[1], [0], [0], [1], [0, 0, 1, 1], [], []>} : vector<2x32xbf16>, vector<32x128xbf16>, vector<2x128xf32> -> vector<2x128xf32>
    %85 = arith.addf %82, %84 : vector<2x128xf32>
    %86 = vector.extract_strided_slice %85 {offsets = [0, 0], sizes = [2, 96], strides = [1, 1]} : vector<2x128xf32> to vector<2x96xf32>
    %cst_22 = arith.constant 5.000000e-01 : f32
    %87 = vector.broadcast %cst_22 : f32 to vector<2x96xf32>
    %88 = arith.mulf %87, %86 : vector<2x96xf32>
    %89 = math.tanh %88 : vector<2x96xf32>
    %cst_23 = arith.constant 5.000000e-01 : f32
    %90 = vector.broadcast %cst_23 : f32 to vector<2x96xf32>
    %91 = arith.mulf %90, %89 : vector<2x96xf32>
    %cst_24 = arith.constant 5.000000e-01 : f32
    %92 = vector.broadcast %cst_24 : f32 to vector<2x96xf32>
    %93 = arith.addf %91, %92 : vector<2x96xf32>
    %94 = vector.extract_strided_slice %85 {offsets = [0, 96], sizes = [2, 32], strides = [1, 1]} : vector<2x128xf32> to vector<2x32xf32>
    %95 = math.tanh %94 : vector<2x32xf32>
    %96 = vector.extract_strided_slice %93 {offsets = [0, 0], sizes = [2, 32], strides = [1, 1]} : vector<2x96xf32> to vector<2x32xf32>
    %97 = vector.extract_strided_slice %93 {offsets = [0, 32], sizes = [2, 32], strides = [1, 1]} : vector<2x96xf32> to vector<2x32xf32>
    %98 = vector.extract_strided_slice %93 {offsets = [0, 64], sizes = [2, 32], strides = [1, 1]} : vector<2x96xf32> to vector<2x32xf32>
    %99 = arith.mulf %97, %78 : vector<2x32xf32>
    %100 = arith.mulf %96, %95 : vector<2x32xf32>
    %101 = arith.addf %99, %100 : vector<2x32xf32>
    %102 = math.tanh %101 : vector<2x32xf32>
    %103 = arith.mulf %98, %102 : vector<2x32xf32>
    %104 = vector.extract_strided_slice %9 {offsets = [4, 0, 0], sizes = [1, 2, 128], strides = [1, 1, 1]} : vector<8x2x128xf32> to vector<1x2x128xf32>
    %105 = vector.shape_cast %104 : vector<1x2x128xf32> to vector<2x128xf32>
    %106 = arith.truncf %103 : vector<2x32xf32> to vector<2x32xbf16>
    %cst_25 = arith.constant dense<0.000000e+00> : vector<2x128xf32>
    %107 = tpu.matmul %106, %0, %cst_25 {dimension_numbers = #tpu.dot_dimension_numbers<[1], [0], [0], [1], [0, 0, 1, 1], [], []>} : vector<2x32xbf16>, vector<32x128xbf16>, vector<2x128xf32> -> vector<2x128xf32>
    %108 = arith.addf %105, %107 : vector<2x128xf32>
    %109 = vector.extract_strided_slice %108 {offsets = [0, 0], sizes = [2, 96], strides = [1, 1]} : vector<2x128xf32> to vector<2x96xf32>
    %cst_26 = arith.constant 5.000000e-01 : f32
    %110 = vector.broadcast %cst_26 : f32 to vector<2x96xf32>
    %111 = arith.mulf %110, %109 : vector<2x96xf32>
    %112 = math.tanh %111 : vector<2x96xf32>
    %cst_27 = arith.constant 5.000000e-01 : f32
    %113 = vector.broadcast %cst_27 : f32 to vector<2x96xf32>
    %114 = arith.mulf %113, %112 : vector<2x96xf32>
    %cst_28 = arith.constant 5.000000e-01 : f32
    %115 = vector.broadcast %cst_28 : f32 to vector<2x96xf32>
    %116 = arith.addf %114, %115 : vector<2x96xf32>
    %117 = vector.extract_strided_slice %108 {offsets = [0, 96], sizes = [2, 32], strides = [1, 1]} : vector<2x128xf32> to vector<2x32xf32>
    %118 = math.tanh %117 : vector<2x32xf32>
    %119 = vector.extract_strided_slice %116 {offsets = [0, 0], sizes = [2, 32], strides = [1, 1]} : vector<2x96xf32> to vector<2x32xf32>
    %120 = vector.extract_strided_slice %116 {offsets = [0, 32], sizes = [2, 32], strides = [1, 1]} : vector<2x96xf32> to vector<2x32xf32>
    %121 = vector.extract_strided_slice %116 {offsets = [0, 64], sizes = [2, 32], strides = [1, 1]} : vector<2x96xf32> to vector<2x32xf32>
    %122 = arith.mulf %120, %101 : vector<2x32xf32>
    %123 = arith.mulf %119, %118 : vector<2x32xf32>
    %124 = arith.addf %122, %123 : vector<2x32xf32>
    %125 = math.tanh %124 : vector<2x32xf32>
    %126 = arith.mulf %121, %125 : vector<2x32xf32>
    %127 = vector.extract_strided_slice %9 {offsets = [5, 0, 0], sizes = [1, 2, 128], strides = [1, 1, 1]} : vector<8x2x128xf32> to vector<1x2x128xf32>
    %128 = vector.shape_cast %127 : vector<1x2x128xf32> to vector<2x128xf32>
    %129 = arith.truncf %126 : vector<2x32xf32> to vector<2x32xbf16>
    %cst_29 = arith.constant dense<0.000000e+00> : vector<2x128xf32>
    %130 = tpu.matmul %129, %0, %cst_29 {dimension_numbers = #tpu.dot_dimension_numbers<[1], [0], [0], [1], [0, 0, 1, 1], [], []>} : vector<2x32xbf16>, vector<32x128xbf16>, vector<2x128xf32> -> vector<2x128xf32>
    %131 = arith.addf %128, %130 : vector<2x128xf32>
    %132 = vector.extract_strided_slice %131 {offsets = [0, 0], sizes = [2, 96], strides = [1, 1]} : vector<2x128xf32> to vector<2x96xf32>
    %cst_30 = arith.constant 5.000000e-01 : f32
    %133 = vector.broadcast %cst_30 : f32 to vector<2x96xf32>
    %134 = arith.mulf %133, %132 : vector<2x96xf32>
    %135 = math.tanh %134 : vector<2x96xf32>
    %cst_31 = arith.constant 5.000000e-01 : f32
    %136 = vector.broadcast %cst_31 : f32 to vector<2x96xf32>
    %137 = arith.mulf %136, %135 : vector<2x96xf32>
    %cst_32 = arith.constant 5.000000e-01 : f32
    %138 = vector.broadcast %cst_32 : f32 to vector<2x96xf32>
    %139 = arith.addf %137, %138 : vector<2x96xf32>
    %140 = vector.extract_strided_slice %131 {offsets = [0, 96], sizes = [2, 32], strides = [1, 1]} : vector<2x128xf32> to vector<2x32xf32>
    %141 = math.tanh %140 : vector<2x32xf32>
    %142 = vector.extract_strided_slice %139 {offsets = [0, 0], sizes = [2, 32], strides = [1, 1]} : vector<2x96xf32> to vector<2x32xf32>
    %143 = vector.extract_strided_slice %139 {offsets = [0, 32], sizes = [2, 32], strides = [1, 1]} : vector<2x96xf32> to vector<2x32xf32>
    %144 = vector.extract_strided_slice %139 {offsets = [0, 64], sizes = [2, 32], strides = [1, 1]} : vector<2x96xf32> to vector<2x32xf32>
    %145 = arith.mulf %143, %124 : vector<2x32xf32>
    %146 = arith.mulf %142, %141 : vector<2x32xf32>
    %147 = arith.addf %145, %146 : vector<2x32xf32>
    %148 = math.tanh %147 : vector<2x32xf32>
    %149 = arith.mulf %144, %148 : vector<2x32xf32>
    %150 = vector.extract_strided_slice %9 {offsets = [6, 0, 0], sizes = [1, 2, 128], strides = [1, 1, 1]} : vector<8x2x128xf32> to vector<1x2x128xf32>
    %151 = vector.shape_cast %150 : vector<1x2x128xf32> to vector<2x128xf32>
    %152 = arith.truncf %149 : vector<2x32xf32> to vector<2x32xbf16>
    %cst_33 = arith.constant dense<0.000000e+00> : vector<2x128xf32>
    %153 = tpu.matmul %152, %0, %cst_33 {dimension_numbers = #tpu.dot_dimension_numbers<[1], [0], [0], [1], [0, 0, 1, 1], [], []>} : vector<2x32xbf16>, vector<32x128xbf16>, vector<2x128xf32> -> vector<2x128xf32>
    %154 = arith.addf %151, %153 : vector<2x128xf32>
    %155 = vector.extract_strided_slice %154 {offsets = [0, 0], sizes = [2, 96], strides = [1, 1]} : vector<2x128xf32> to vector<2x96xf32>
    %cst_34 = arith.constant 5.000000e-01 : f32
    %156 = vector.broadcast %cst_34 : f32 to vector<2x96xf32>
    %157 = arith.mulf %156, %155 : vector<2x96xf32>
    %158 = math.tanh %157 : vector<2x96xf32>
    %cst_35 = arith.constant 5.000000e-01 : f32
    %159 = vector.broadcast %cst_35 : f32 to vector<2x96xf32>
    %160 = arith.mulf %159, %158 : vector<2x96xf32>
    %cst_36 = arith.constant 5.000000e-01 : f32
    %161 = vector.broadcast %cst_36 : f32 to vector<2x96xf32>
    %162 = arith.addf %160, %161 : vector<2x96xf32>
    %163 = vector.extract_strided_slice %154 {offsets = [0, 96], sizes = [2, 32], strides = [1, 1]} : vector<2x128xf32> to vector<2x32xf32>
    %164 = math.tanh %163 : vector<2x32xf32>
    %165 = vector.extract_strided_slice %162 {offsets = [0, 0], sizes = [2, 32], strides = [1, 1]} : vector<2x96xf32> to vector<2x32xf32>
    %166 = vector.extract_strided_slice %162 {offsets = [0, 32], sizes = [2, 32], strides = [1, 1]} : vector<2x96xf32> to vector<2x32xf32>
    %167 = vector.extract_strided_slice %162 {offsets = [0, 64], sizes = [2, 32], strides = [1, 1]} : vector<2x96xf32> to vector<2x32xf32>
    %168 = arith.mulf %166, %147 : vector<2x32xf32>
    %169 = arith.mulf %165, %164 : vector<2x32xf32>
    %170 = arith.addf %168, %169 : vector<2x32xf32>
    %171 = math.tanh %170 : vector<2x32xf32>
    %172 = arith.mulf %167, %171 : vector<2x32xf32>
    %173 = vector.extract_strided_slice %9 {offsets = [7, 0, 0], sizes = [1, 2, 128], strides = [1, 1, 1]} : vector<8x2x128xf32> to vector<1x2x128xf32>
    %174 = vector.shape_cast %173 : vector<1x2x128xf32> to vector<2x128xf32>
    %175 = arith.truncf %172 : vector<2x32xf32> to vector<2x32xbf16>
    %cst_37 = arith.constant dense<0.000000e+00> : vector<2x128xf32>
    %176 = tpu.matmul %175, %0, %cst_37 {dimension_numbers = #tpu.dot_dimension_numbers<[1], [0], [0], [1], [0, 0, 1, 1], [], []>} : vector<2x32xbf16>, vector<32x128xbf16>, vector<2x128xf32> -> vector<2x128xf32>
    %177 = arith.addf %174, %176 : vector<2x128xf32>
    %178 = vector.extract_strided_slice %177 {offsets = [0, 0], sizes = [2, 96], strides = [1, 1]} : vector<2x128xf32> to vector<2x96xf32>
    %cst_38 = arith.constant 5.000000e-01 : f32
    %179 = vector.broadcast %cst_38 : f32 to vector<2x96xf32>
    %180 = arith.mulf %179, %178 : vector<2x96xf32>
    %181 = math.tanh %180 : vector<2x96xf32>
    %cst_39 = arith.constant 5.000000e-01 : f32
    %182 = vector.broadcast %cst_39 : f32 to vector<2x96xf32>
    %183 = arith.mulf %182, %181 : vector<2x96xf32>
    %cst_40 = arith.constant 5.000000e-01 : f32
    %184 = vector.broadcast %cst_40 : f32 to vector<2x96xf32>
    %185 = arith.addf %183, %184 : vector<2x96xf32>
    %186 = vector.extract_strided_slice %177 {offsets = [0, 96], sizes = [2, 32], strides = [1, 1]} : vector<2x128xf32> to vector<2x32xf32>
    %187 = math.tanh %186 : vector<2x32xf32>
    %188 = vector.extract_strided_slice %185 {offsets = [0, 0], sizes = [2, 32], strides = [1, 1]} : vector<2x96xf32> to vector<2x32xf32>
    %189 = vector.extract_strided_slice %185 {offsets = [0, 32], sizes = [2, 32], strides = [1, 1]} : vector<2x96xf32> to vector<2x32xf32>
    %190 = vector.extract_strided_slice %185 {offsets = [0, 64], sizes = [2, 32], strides = [1, 1]} : vector<2x96xf32> to vector<2x32xf32>
    %191 = arith.mulf %189, %170 : vector<2x32xf32>
    %192 = arith.mulf %188, %187 : vector<2x32xf32>
    %193 = arith.addf %191, %192 : vector<2x32xf32>
    %194 = math.tanh %193 : vector<2x32xf32>
    %195 = arith.mulf %190, %194 : vector<2x32xf32>
    %196 = arith.truncf %195 : vector<2x32xf32> to vector<2x32xbf16>
    %c0_41 = arith.constant 0 : index
    %c0_42 = arith.constant 0 : index
    %197 = vector.load %arg5[%c0_41, %c0_42] : memref<32x4xbf16, #tpu.memory_space<vmem>>, vector<32x4xbf16>
    %cst_43 = arith.constant dense<0.000000e+00> : vector<2x4xf32>
    %198 = tpu.matmul %196, %197, %cst_43 {dimension_numbers = #tpu.dot_dimension_numbers<[1], [0], [0], [1], [0, 0, 1, 1], [], []>} : vector<2x32xbf16>, vector<32x4xbf16>, vector<2x4xf32> -> vector<2x4xf32>
    %c0_44 = arith.constant 0 : index
    %c0_45 = arith.constant 0 : index
    %199 = vector.load %arg6[%c0_44, %c0_45] : memref<1x4xf32, #tpu.memory_space<vmem>>, vector<1x4xf32>
    %200 = vector.broadcast %199 : vector<1x4xf32> to vector<2x4xf32>
    %201 = arith.addf %198, %200 : vector<2x4xf32>
    %c0_46 = arith.constant 0 : index
    %c0_47 = arith.constant 0 : index
    %202 = vector.load %arg7[%c0_46, %c0_47] : memref<2x4xf32, #tpu.memory_space<vmem>>, vector<2x4xf32>
    tpu.vector_store %arg7[%c0_46, %c0_47], %201 {strides = array<i32>} : memref<2x4xf32, #tpu.memory_space<vmem>>, vector<2x4xf32>,
    return
  }
  func.func @transform_0(%arg0: i32) -> (i32, i32) {
    %c0_i32 = arith.constant 0 : i32
    %c0_i32_0 = arith.constant 0 : i32
    return %arg0, %c0_i32 : i32, i32
  }
  func.func @transform_1(%arg0: i32) -> (i32, i32) {
    %c0_i32 = arith.constant 0 : i32
    %c0_i32_0 = arith.constant 0 : i32
    %c0_i32_1 = arith.constant 0 : i32
    return %c0_i32, %c0_i32_0 : i32, i32
  }
  func.func @transform_2(%arg0: i32) -> (i32, i32) {
    %c0_i32 = arith.constant 0 : i32
    %c0_i32_0 = arith.constant 0 : i32
    %c0_i32_1 = arith.constant 0 : i32
    return %c0_i32, %c0_i32_0 : i32, i32
  }
  func.func @transform_3(%arg0: i32) -> (i32, i32) {
    %c0_i32 = arith.constant 0 : i32
    %c0_i32_0 = arith.constant 0 : i32
    %c0_i32_1 = arith.constant 0 : i32
    return %c0_i32, %c0_i32_0 : i32, i32
  }
  func.func @transform_4(%arg0: i32) -> (i32, i32) {
    %c0_i32 = arith.constant 0 : i32
    %c0_i32_0 = arith.constant 0 : i32
    %c0_i32_1 = arith.constant 0 : i32
    return %c0_i32, %c0_i32_0 : i32, i32
  }
  func.func @transform_5(%arg0: i32) -> (i32, i32) {
    %c0_i32 = arith.constant 0 : i32
    %c0_i32_0 = arith.constant 0 : i32
    %c0_i32_1 = arith.constant 0 : i32
    return %c0_i32, %c0_i32_0 : i32, i32
  }
  func.func @transform_6(%arg0: i32) -> (i32, i32) {
    %c0_i32 = arith.constant 0 : i32
    %c0_i32_0 = arith.constant 0 : i32
    return %arg0, %c0_i32 : i32, i32
  }
}

</mosaic_0001>

<llo_original>
// kernel: lstm_model_forward.1
$region0: #{lstm_model_forward.1}
  #allocation0 [shape = 'u32[]', space=smem, size = 0x4, offset = 0x4, fixed_abs, tag = 'smem constant byte address 0x4 - core index']
  #allocation1 [shape = 'u32[144,128]{1,0:T(1,128)}', space=vmem, size = 0x12000, scoped, tag = 'internal scratch']
  %s0 = inlined_call_operand.vmem [shape: f32[16,8], index: 0, kind: input, shape index: {}]
  %s1 = inlined_call_operand.vmem [shape: bf16[8,128], index: 1, kind: input, shape index: {}]
  %s2 = inlined_call_operand.vmem [shape: bf16[32,128], index: 2, kind: input, shape index: {}]
  %s3 = inlined_call_operand.vmem [shape: f32[1,128], index: 3, kind: input, shape index: {}]
  %s4 = inlined_call_operand.vmem [shape: bf16[32,4], index: 4, kind: input, shape index: {}]
  %s5 = inlined_call_operand.vmem [shape: f32[1,4], index: 5, kind: input, shape index: {}]
  %s6 = inlined_call_operand.hbm [shape: f32[2,4], index: 6, kind: output, shape index: {}]
  %s7 = sld [smem:[#allocation0]]
  $region34: #{lstm_model_forward.1} parent=0
    _
  %s9 = ssub.s32 1, %s7
  %s10 = scalar_select 0, %s9, %s7
  $region1: #{lstm_model_forward.1} parent=0
    #allocation2 [shape = 'u8[1024]{0}', space=vmem, size = 0x400, scoped, tag = 'output window, operand 0, single buffered']
    #allocation3 [shape = 's32[1]{0}', space=sflag, size = 0x4, scoped, tag = 'scoped memory for lstm_model_forward.1']
    %11 = vsyncpa [#allocation3], 0
    // Predicated region
    $region2: #{lstm_model_forward.1} parent=1 // pred_check
      _
    $region3: #{lstm_model_forward.1} parent=1 // pred_check_branch
      %13 = sbr.rel (0) target = $region5
    $region4: #{lstm_model_forward.1} parent=1 // pred_region
      _
    $region5: #{lstm_model_forward.1} parent=1 // pred_fallthru
      _
    // Predicated region
    $region6: #{lstm_model_forward.1} parent=1 // pred_check
      _
    $region7: #{lstm_model_forward.1} parent=1 // pred_check_branch
      %15 = sbr.rel (0) target = $region9
    $region8: #{lstm_model_forward.1} parent=1 // pred_region
      _
    $region9: #{lstm_model_forward.1} parent=1 // pred_fallthru
      _
    // Predicated region
    $region10: #{lstm_model_forward.1} parent=1 // pred_check
      _
    $region11: #{lstm_model_forward.1} parent=1 // pred_check_branch
      %17 = sbr.rel (0) target = $region13
    $region12: #{lstm_model_forward.1} parent=1 // pred_region
      _
    $region13: #{lstm_model_forward.1} parent=1 // pred_fallthru
      _
    // Predicated region
    $region14: #{lstm_model_forward.1} parent=1 // pred_check
      _
    $region15: #{lstm_model_forward.1} parent=1 // pred_check_branch
      %19 = sbr.rel (0) target = $region17
    $region16: #{lstm_model_forward.1} parent=1 // pred_region
      _
    $region17: #{lstm_model_forward.1} parent=1 // pred_fallthru
      _
    // Predicated region
    $region18: #{lstm_model_forward.1} parent=1 // pred_check
      _
    $region19: #{lstm_model_forward.1} parent=1 // pred_check_branch
      %21 = sbr.rel (0) target = $region21
    $region20: #{lstm_model_forward.1} parent=1 // pred_region
      _
    $region21: #{lstm_model_forward.1} parent=1 // pred_fallthru
      _
    // Predicated region
    $region22: #{lstm_model_forward.1} parent=1 // pred_check
      _
    $region23: #{lstm_model_forward.1} parent=1 // pred_check_branch
      %23 = sbr.rel (0) target = $region25
    $region24: #{lstm_model_forward.1} parent=1 // pred_region
      _
    $region25: #{lstm_model_forward.1} parent=1 // pred_fallthru
      _
    %v25 = vld [vmem:[%s2] sm:$0xf]
    %v26 = vld [vmem:[%s2 + $0x4] sm:$0xf]
    %v27 = vld [vmem:[%s2 + $0x8] sm:$0xf]
    %v28 = vld [vmem:[%s2 + $0xc] sm:$0xf]
    %v29 = vld [vmem:[%s0] sm:$0xff]
    %v30 = vld [vmem:[%s0 + $0x8] sm:$0xff]
    %v31 = vpack.c.bf16 %v30, %v29
    %v32 = vld [vmem:[%s1] sm:$0xf]
    %v33 = vld [vmem:[%s3] sm:$0x1]
    %v35 = vlaneseq
    %v36 = vshrl.u32 %v35, 7
    %v37 = vsub.s32 0, %v36
    %v38 = vrot.slane %v33, %v37
    %vm40 = vcmask 64512
    %v42 = vsel %vm40, %v31, 0
    %vm44 = vcmask 1043456
    %v46 = vsel %vm44, %v32, 0
    %48 = vmatprep.subr.bf16.mxu0 0
    %49 = vmatpush1.bf16.msra.mxu0 %v46
    %50 = vmatprep.subr.bf16.mxu0 0
    %51 = vmatpush1.bf16.msra.mxu0 0
    %52 = vmatprep.subr.bf16.mxu0 0
    %53 = vmatpush1.bf16.msra.mxu0 0
    %54 = vmatprep.subr.bf16.mxu0 0
    %55 = vmatpush1.bf16.msra.mxu0 0
    %56 = vmatprep.subr.bf16.mxu0 0
    %57 = vmatpush1.bf16.msra.mxu0 0
    %58 = vmatprep.subr.bf16.mxu0 0
    %59 = vmatpush1.bf16.msra.mxu0 0
    %60 = vmatprep.subr.bf16.mxu0 0
    %61 = vmatpush1.bf16.msra.mxu0 0
    %62 = vmatprep.subr.bf16.mxu0 0
    %63 = vmatpush1.bf16.msra.mxu0 0
    %64 = vmatprep.subr.bf16.mxu0 0
    %65 = vmatpush1.bf16.msra.mxu0 0
    %66 = vmatprep.subr.bf16.mxu0 0
    %67 = vmatpush1.bf16.msra.mxu0 0
    %68 = vmatprep.subr.bf16.mxu0 0
    %69 = vmatpush1.bf16.msra.mxu0 0
    %70 = vmatprep.subr.bf16.mxu0 0
    %71 = vmatpush1.bf16.msra.mxu0 0
    %72 = vmatprep.subr.bf16.mxu0 0
    %73 = vmatpush1.bf16.msra.mxu0 0
    %74 = vmatprep.subr.bf16.mxu0 0
    %75 = vmatpush1.bf16.msra.mxu0 0
    %76 = vmatprep.subr.bf16.mxu0 0
    %77 = vmatpush1.bf16.msra.mxu0 0
    %78 = vmatprep.subr.bf16.mxu0 0
    %79 = vmatpush1.bf16.msra.mxu0 0
    %80 = vmatprep.mubr.bf16.mxu0 0
    %81 = vmatmul.mubr.bf16.gmra.mrb[0].mxu0 %v42
    %v82 = vpop.f32.mrb[0].mxu0
    %v83 = vadd.f32 %v38, %v82
    %v84 = vpop.f32.mrb[0].mxu0
    %v85 = vpop.f32.mrb[0].mxu0
    %v86 = vadd.f32 %v38, %v85
    %v87 = vpop.f32.mrb[0].mxu0
    %88 = vdwg.mxu0
    %v89 = vcombine.high %v83, 0.0
    %v91 = vunpack.c.l.s4 1983009808
    %v92 = vunpack.c.0.s8 %v91
    %v93 = vlaneseq
    %v94 = vshrl.u32 %v93, 7
    %v95 = vsub.s32 %v92, %v94
    %v96 = vrot.slane %v83, %v95
    %v98 = vunpack.c.l.s4 1983009808
    %v99 = vunpack.c.0.s8 %v98
    %v100 = vlaneseq
    %v101 = vshrl.u32 %v100, 7
    %v102 = vsub.s32 %v99, %v101
    %v103 = vrot.slane %v89, %v102
    %v104 = vcombine.high %v86, 0.0
    %v106 = vunpack.c.l.s4 1983009808
    %v107 = vunpack.c.0.s8 %v106
    %v108 = vlaneseq
    %v109 = vshrl.u32 %v108, 7
    %v110 = vsub.s32 %v107, %v109
    %v111 = vrot.slane %v86, %v110
    %v113 = vunpack.c.l.s4 1983009808
    %v114 = vunpack.c.0.s8 %v113
    %v115 = vlaneseq
    %v116 = vshrl.u32 %v115, 7
    %v117 = vsub.s32 %v114, %v116
    %v118 = vrot.slane %v104, %v117
    %v119 = vcombine.low %v96, %v111
    %v120 = vcombine.high %v96, %v111
    %v122 = vunpack.c.l.s4 1934713408
    %v123 = vunpack.c.0.s8 %v122
    %v124 = vlaneseq
    %v125 = vshrl.u32 %v124, 7
    %v126 = vsub.s32 %v123, %v125
    %v127 = vrot.slane %v119, %v126
    %v129 = vunpack.c.l.s4 1934713408
    %v130 = vunpack.c.0.s8 %v129
    %v131 = vlaneseq
    %v132 = vshrl.u32 %v131, 7
    %v133 = vsub.s32 %v130, %v132
    %v134 = vrot.slane %v120, %v133
    %v135 = vcombine.low %v103, %v118
    %v136 = vcombine.high %v103, %v118
    %v138 = vunpack.c.l.s4 1934713408
    %v139 = vunpack.c.0.s8 %v138
    %v140 = vlaneseq
    %v141 = vshrl.u32 %v140, 7
    %v142 = vsub.s32 %v139, %v141
    %v143 = vrot.slane %v135, %v142
    %v145 = vunpack.c.l.s4 1934713408
    %v146 = vunpack.c.0.s8 %v145
    %v147 = vlaneseq
    %v148 = vshrl.u32 %v147, 7
    %v149 = vsub.s32 %v146, %v148
    %v150 = vrot.slane %v136, %v149
    %v151 = vcombine.high %v127, 0.0
    %v152 = vcombine.high %v134, 0.0
    %v153 = vcombine.high %v143, 0.0
    %v154 = vcombine.high %v150, 0.0
    %v159 = vunpack.c.l.b16 %v25
    %v160 = vunpack.c.l.b16 %v26
    %v161 = vunpack.c.l.b16 %v27
    %v162 = vunpack.c.l.b16 %v28
    %v163 = vpack.c.b16 %v160, %v159
    %v164 = vpack.c.b16 %v162, %v161
    %vm167 = vcmask 261120
    %v169 = vsel %vm167, 0, 0
    %171 = vmatprep.subr.bf16.mxu0 0
    %172 = vmatpush1.bf16.msra.mxu0 %v163
    %173 = vmatprep.subr.bf16.mxu0 0
    %174 = vmatpush1.bf16.msra.mxu0 %v164
    %175 = vmatprep.subr.bf16.mxu0 0
    %176 = vmatpush1.bf16.msra.mxu0 0
    %177 = vmatprep.subr.bf16.mxu0 0
    %178 = vmatpush1.bf16.msra.mxu0 0
    %179 = vmatprep.subr.bf16.mxu0 0
    %180 = vmatpush1.bf16.msra.mxu0 0
    %181 = vmatprep.subr.bf16.mxu0 0
    %182 = vmatpush1.bf16.msra.mxu0 0
    %183 = vmatprep.subr.bf16.mxu0 0
    %184 = vmatpush1.bf16.msra.mxu0 0
    %185 = vmatprep.subr.bf16.mxu0 0
    %186 = vmatpush1.bf16.msra.mxu0 0
    %187 = vmatprep.subr.bf16.mxu0 0
    %188 = vmatpush1.bf16.msra.mxu0 0
    %189 = vmatprep.subr.bf16.mxu0 0
    %190 = vmatpush1.bf16.msra.mxu0 0
    %191 = vmatprep.subr.bf16.mxu0 0
    %192 = vmatpush1.bf16.msra.mxu0 0
    %193 = vmatprep.subr.bf16.mxu0 0
    %194 = vmatpush1.bf16.msra.mxu0 0
    %195 = vmatprep.subr.bf16.mxu0 0
    %196 = vmatpush1.bf16.msra.mxu0 0
    %197 = vmatprep.subr.bf16.mxu0 0
    %198 = vmatpush1.bf16.msra.mxu0 0
    %199 = vmatprep.subr.bf16.mxu0 0
    %200 = vmatpush1.bf16.msra.mxu0 0
    %201 = vmatprep.subr.bf16.mxu0 0
    %202 = vmatpush1.bf16.msra.mxu0 0
    %203 = vmatprep.mubr.bf16.mxu0 0
    %204 = vmatmul.mubr.bf16.gmra.mrb[0].mxu0 %v169
    %v205 = vpop.f32.mrb[0].mxu0
    %v206 = vadd.f32 0.0, %v205
    %v207 = vpop.f32.mrb[0].mxu0
    %v208 = vpop.f32.mrb[0].mxu0
    %v209 = vpop.f32.mrb[0].mxu0
    %210 = vdwg.mxu0
    %v211 = vadd.f32 %v127, %v206
    %v212 = vmul.f32 %v211, 0.5
    %v213 = vtanh.pop %v212
    %v214 = vmul.f32 %v213, 0.5
    %v215 = vadd.f32 %v214, 0.5
    %v216 = vtanh.pop %v211
    %v217 = vmul.f32 %v215, 0.0
    %219 = vrot.lane.b32.xlu0 %v216, 32
    %v220 = vpop.permute.xlu0 %219
    %v222 = vmul.f32 %v215, %v220
    %224 = vrot.lane.b32.xlu0 %v222, 32
    %v225 = vpop.permute.xlu0 %224
    %v227 = vadd.f32 %v217, %v225
    %v228 = vtanh.pop %v227
    %230 = vrot.lane.b32.xlu0 %v228, 32
    %v231 = vpop.permute.xlu0 %230
    %v233 = vmul.f32 %v215, %v231
    %v234 = vpack.c.bf16 %v233, %v233
    %236 = vrot.lane.b32.xlu0 %v234, 64
    %v237 = vpop.permute.xlu0 %236
    %v239 = vsel %vm167, %v237, 0
    %241 = vmatprep.subr.bf16.mxu0 0
    %242 = vmatpush1.bf16.msra.mxu0 %v163
    %243 = vmatprep.subr.bf16.mxu0 0
    %244 = vmatpush1.bf16.msra.mxu0 %v164
    %245 = vmatprep.subr.bf16.mxu0 0
    %246 = vmatpush1.bf16.msra.mxu0 0
    %247 = vmatprep.subr.bf16.mxu0 0
    %248 = vmatpush1.bf16.msra.mxu0 0
    %249 = vmatprep.subr.bf16.mxu0 0
    %250 = vmatpush1.bf16.msra.mxu0 0
    %251 = vmatprep.subr.bf16.mxu0 0
    %252 = vmatpush1.bf16.msra.mxu0 0
    %253 = vmatprep.subr.bf16.mxu0 0
    %254 = vmatpush1.bf16.msra.mxu0 0
    %255 = vmatprep.subr.bf16.mxu0 0
    %256 = vmatpush1.bf16.msra.mxu0 0
    %257 = vmatprep.subr.bf16.mxu0 0
    %258 = vmatpush1.bf16.msra.mxu0 0
    %259 = vmatprep.subr.bf16.mxu0 0
    %260 = vmatpush1.bf16.msra.mxu0 0
    %261 = vmatprep.subr.bf16.mxu0 0
    %262 = vmatpush1.bf16.msra.mxu0 0
    %263 = vmatprep.subr.bf16.mxu0 0
    %264 = vmatpush1.bf16.msra.mxu0 0
    %265 = vmatprep.subr.bf16.mxu0 0
    %266 = vmatpush1.bf16.msra.mxu0 0
    %267 = vmatprep.subr.bf16.mxu0 0
    %268 = vmatpush1.bf16.msra.mxu0 0
    %269 = vmatprep.subr.bf16.mxu0 0
    %270 = vmatpush1.bf16.msra.mxu0 0
    %271 = vmatprep.subr.bf16.mxu0 0
    %272 = vmatpush1.bf16.msra.mxu0 0
    %273 = vmatprep.mubr.bf16.mxu0 0
    %274 = vmatmul.mubr.bf16.gmra.mrb[0].mxu0 %v239
    %v275 = vpop.f32.mrb[0].mxu0
    %v276 = vadd.f32 0.0, %v275
    %v277 = vpop.f32.mrb[0].mxu0
    %v278 = vpop.f32.mrb[0].mxu0
    %v279 = vpop.f32.mrb[0].mxu0
    %280 = vdwg.mxu0
    %v281 = vadd.f32 %v151, %v276
    %v282 = vmul.f32 %v281, 0.5
    %v283 = vtanh.pop %v282
    %v284 = vmul.f32 %v283, 0.5
    %v285 = vadd.f32 %v284, 0.5
    %v286 = vtanh.pop %v281
    %v287 = vmul.f32 %v285, %v227
    %289 = vrot.lane.b32.xlu0 %v286, 32
    %v290 = vpop.permute.xlu0 %289
    %v292 = vmul.f32 %v285, %v290
    %294 = vrot.lane.b32.xlu0 %v292, 32
    %v295 = vpop.permute.xlu0 %294
    %v297 = vadd.f32 %v287, %v295
    %v298 = vtanh.pop %v297
    %300 = vrot.lane.b32.xlu0 %v298, 32
    %v301 = vpop.permute.xlu0 %300
    %v303 = vmul.f32 %v285, %v301
    %v304 = vpack.c.bf16 %v303, %v303
    %306 = vrot.lane.b32.xlu0 %v304, 64
    %v307 = vpop.permute.xlu0 %306
    %v309 = vsel %vm167, %v307, 0
    %311 = vmatprep.subr.bf16.mxu0 0
    %312 = vmatpush1.bf16.msra.mxu0 %v163
    %313 = vmatprep.subr.bf16.mxu0 0
    %314 = vmatpush1.bf16.msra.mxu0 %v164
    %315 = vmatprep.subr.bf16.mxu0 0
    %316 = vmatpush1.bf16.msra.mxu0 0
    %317 = vmatprep.subr.bf16.mxu0 0
    %318 = vmatpush1.bf16.msra.mxu0 0
    %319 = vmatprep.subr.bf16.mxu0 0
    %320 = vmatpush1.bf16.msra.mxu0 0
    %321 = vmatprep.subr.bf16.mxu0 0
    %322 = vmatpush1.bf16.msra.mxu0 0
    %323 = vmatprep.subr.bf16.mxu0 0
    %324 = vmatpush1.bf16.msra.mxu0 0
    %325 = vmatprep.subr.bf16.mxu0 0
    %326 = vmatpush1.bf16.msra.mxu0 0
    %327 = vmatprep.subr.bf16.mxu0 0
    %328 = vmatpush1.bf16.msra.mxu0 0
    %329 = vmatprep.subr.bf16.mxu0 0
    %330 = vmatpush1.bf16.msra.mxu0 0
    %331 = vmatprep.subr.bf16.mxu0 0
    %332 = vmatpush1.bf16.msra.mxu0 0
    %333 = vmatprep.subr.bf16.mxu0 0
    %334 = vmatpush1.bf16.msra.mxu0 0
    %335 = vmatprep.subr.bf16.mxu0 0
    %336 = vmatpush1.bf16.msra.mxu0 0
    %337 = vmatprep.subr.bf16.mxu0 0
    %338 = vmatpush1.bf16.msra.mxu0 0
    %339 = vmatprep.subr.bf16.mxu0 0
    %340 = vmatpush1.bf16.msra.mxu0 0
    %341 = vmatprep.subr.bf16.mxu0 0
    %342 = vmatpush1.bf16.msra.mxu0 0
    %343 = vmatprep.mubr.bf16.mxu0 0
    %344 = vmatmul.mubr.bf16.gmra.mrb[0].mxu0 %v309
    %v345 = vpop.f32.mrb[0].mxu0
    %v346 = vadd.f32 0.0, %v345
    %v347 = vpop.f32.mrb[0].mxu0
    %v348 = vpop.f32.mrb[0].mxu0
    %v349 = vpop.f32.mrb[0].mxu0
    %350 = vdwg.mxu0
    %v351 = vadd.f32 %v134, %v346
    %v352 = vmul.f32 %v351, 0.5
    %v353 = vtanh.pop %v352
    %v354 = vmul.f32 %v353, 0.5
    %v355 = vadd.f32 %v354, 0.5
    %v356 = vtanh.pop %v351
    %v357 = vmul.f32 %v355, %v297
    %359 = vrot.lane.b32.xlu0 %v356, 32
    %v360 = vpop.permute.xlu0 %359
    %v362 = vmul.f32 %v355, %v360
    %364 = vrot.lane.b32.xlu0 %v362, 32
    %v365 = vpop.permute.xlu0 %364
    %v367 = vadd.f32 %v357, %v365
    %v368 = vtanh.pop %v367
    %370 = vrot.lane.b32.xlu0 %v368, 32
    %v371 = vpop.permute.xlu0 %370
    %v373 = vmul.f32 %v355, %v371
    %v374 = vpack.c.bf16 %v373, %v373
    %376 = vrot.lane.b32.xlu0 %v374, 64
    %v377 = vpop.permute.xlu0 %376
    %v379 = vsel %vm167, %v377, 0
    %381 = vmatprep.subr.bf16.mxu0 0
    %382 = vmatpush1.bf16.msra.mxu0 %v163
    %383 = vmatprep.subr.bf16.mxu0 0
    %384 = vmatpush1.bf16.msra.mxu0 %v164
    %385 = vmatprep.subr.bf16.mxu0 0
    %386 = vmatpush1.bf16.msra.mxu0 0
    %387 = vmatprep.subr.bf16.mxu0 0
    %388 = vmatpush1.bf16.msra.mxu0 0
    %389 = vmatprep.subr.bf16.mxu0 0
    %390 = vmatpush1.bf16.msra.mxu0 0
    %391 = vmatprep.subr.bf16.mxu0 0
    %392 = vmatpush1.bf16.msra.mxu0 0
    %393 = vmatprep.subr.bf16.mxu0 0
    %394 = vmatpush1.bf16.msra.mxu0 0
    %395 = vmatprep.subr.bf16.mxu0 0
    %396 = vmatpush1.bf16.msra.mxu0 0
    %397 = vmatprep.subr.bf16.mxu0 0
    %398 = vmatpush1.bf16.msra.mxu0 0
    %399 = vmatprep.subr.bf16.mxu0 0
    %400 = vmatpush1.bf16.msra.mxu0 0
    %401 = vmatprep.subr.bf16.mxu0 0
    %402 = vmatpush1.bf16.msra.mxu0 0
    %403 = vmatprep.subr.bf16.mxu0 0
    %404 = vmatpush1.bf16.msra.mxu0 0
    %405 = vmatprep.subr.bf16.mxu0 0
    %406 = vmatpush1.bf16.msra.mxu0 0
    %407 = vmatprep.subr.bf16.mxu0 0
    %408 = vmatpush1.bf16.msra.mxu0 0
    %409 = vmatprep.subr.bf16.mxu0 0
    %410 = vmatpush1.bf16.msra.mxu0 0
    %411 = vmatprep.subr.bf16.mxu0 0
    %412 = vmatpush1.bf16.msra.mxu0 0
    %413 = vmatprep.mubr.bf16.mxu0 0
    %414 = vmatmul.mubr.bf16.gmra.mrb[0].mxu0 %v379
    %v415 = vpop.f32.mrb[0].mxu0
    %v416 = vadd.f32 0.0, %v415
    %v417 = vpop.f32.mrb[0].mxu0
    %v418 = vpop.f32.mrb[0].mxu0
    %v419 = vpop.f32.mrb[0].mxu0
    %420 = vdwg.mxu0
    %v421 = vadd.f32 %v152, %v416
    %v422 = vmul.f32 %v421, 0.5
    %v423 = vtanh.pop %v422
    %v424 = vmul.f32 %v423, 0.5
    %v425 = vadd.f32 %v424, 0.5
    %v426 = vtanh.pop %v421
    %v427 = vmul.f32 %v425, %v367
    %429 = vrot.lane.b32.xlu0 %v426, 32
    %v430 = vpop.permute.xlu0 %429
    %v432 = vmul.f32 %v425, %v430
    %434 = vrot.lane.b32.xlu0 %v432, 32
    %v435 = vpop.permute.xlu0 %434
    %v437 = vadd.f32 %v427, %v435
    %v438 = vtanh.pop %v437
    %440 = vrot.lane.b32.xlu0 %v438, 32
    %v441 = vpop.permute.xlu0 %440
    %v443 = vmul.f32 %v425, %v441
    %v444 = vpack.c.bf16 %v443, %v443
    %446 = vrot.lane.b32.xlu0 %v444, 64
    %v447 = vpop.permute.xlu0 %446
    %v449 = vsel %vm167, %v447, 0
    %451 = vmatprep.subr.bf16.mxu0 0
    %452 = vmatpush1.bf16.msra.mxu0 %v163
    %453 = vmatprep.subr.bf16.mxu0 0
    %454 = vmatpush1.bf16.msra.mxu0 %v164
    %455 = vmatprep.subr.bf16.mxu0 0
    %456 = vmatpush1.bf16.msra.mxu0 0
    %457 = vmatprep.subr.bf16.mxu0 0
    %458 = vmatpush1.bf16.msra.mxu0 0
    %459 = vmatprep.subr.bf16.mxu0 0
    %460 = vmatpush1.bf16.msra.mxu0 0
    %461 = vmatprep.subr.bf16.mxu0 0
    %462 = vmatpush1.bf16.msra.mxu0 0
    %463 = vmatprep.subr.bf16.mxu0 0
    %464 = vmatpush1.bf16.msra.mxu0 0
    %465 = vmatprep.subr.bf16.mxu0 0
    %466 = vmatpush1.bf16.msra.mxu0 0
    %467 = vmatprep.subr.bf16.mxu0 0
    %468 = vmatpush1.bf16.msra.mxu0 0
    %469 = vmatprep.subr.bf16.mxu0 0
    %470 = vmatpush1.bf16.msra.mxu0 0
    %471 = vmatprep.subr.bf16.mxu0 0
    %472 = vmatpush1.bf16.msra.mxu0 0
    %473 = vmatprep.subr.bf16.mxu0 0
    %474 = vmatpush1.bf16.msra.mxu0 0
    %475 = vmatprep.subr.bf16.mxu0 0
    %476 = vmatpush1.bf16.msra.mxu0 0
    %477 = vmatprep.subr.bf16.mxu0 0
    %478 = vmatpush1.bf16.msra.mxu0 0
    %479 = vmatprep.subr.bf16.mxu0 0
    %480 = vmatpush1.bf16.msra.mxu0 0
    %481 = vmatprep.subr.bf16.mxu0 0
    %482 = vmatpush1.bf16.msra.mxu0 0
    %483 = vmatprep.mubr.bf16.mxu0 0
    %484 = vmatmul.mubr.bf16.gmra.mrb[0].mxu0 %v449
    %v485 = vpop.f32.mrb[0].mxu0
    %v486 = vadd.f32 0.0, %v485
    %v487 = vpop.f32.mrb[0].mxu0
    %v488 = vpop.f32.mrb[0].mxu0
    %v489 = vpop.f32.mrb[0].mxu0
    %490 = vdwg.mxu0
    %v491 = vadd.f32 %v143, %v486
    %v492 = vmul.f32 %v491, 0.5
    %v493 = vtanh.pop %v492
    %v494 = vmul.f32 %v493, 0.5
    %v495 = vadd.f32 %v494, 0.5
    %v496 = vtanh.pop %v491
    %v497 = vmul.f32 %v495, %v437
    %499 = vrot.lane.b32.xlu0 %v496, 32
    %v500 = vpop.permute.xlu0 %499
    %v502 = vmul.f32 %v495, %v500
    %504 = vrot.lane.b32.xlu0 %v502, 32
    %v505 = vpop.permute.xlu0 %504
    %v507 = vadd.f32 %v497, %v505
    %v508 = vtanh.pop %v507
    %510 = vrot.lane.b32.xlu0 %v508, 32
    %v511 = vpop.permute.xlu0 %510
    %v513 = vmul.f32 %v495, %v511
    %v514 = vpack.c.bf16 %v513, %v513
    %516 = vrot.lane.b32.xlu0 %v514, 64
    %v517 = vpop.permute.xlu0 %516
    %v519 = vsel %vm167, %v517, 0
    %521 = vmatprep.subr.bf16.mxu0 0
    %522 = vmatpush1.bf16.msra.mxu0 %v163
    %523 = vmatprep.subr.bf16.mxu0 0
    %524 = vmatpush1.bf16.msra.mxu0 %v164
    %525 = vmatprep.subr.bf16.mxu0 0
    %526 = vmatpush1.bf16.msra.mxu0 0
    %527 = vmatprep.subr.bf16.mxu0 0
    %528 = vmatpush1.bf16.msra.mxu0 0
    %529 = vmatprep.subr.bf16.mxu0 0
    %530 = vmatpush1.bf16.msra.mxu0 0
    %531 = vmatprep.subr.bf16.mxu0 0
    %532 = vmatpush1.bf16.msra.mxu0 0
    %533 = vmatprep.subr.bf16.mxu0 0
    %534 = vmatpush1.bf16.msra.mxu0 0
    %535 = vmatprep.subr.bf16.mxu0 0
    %536 = vmatpush1.bf16.msra.mxu0 0
    %537 = vmatprep.subr.bf16.mxu0 0
    %538 = vmatpush1.bf16.msra.mxu0 0
    %539 = vmatprep.subr.bf16.mxu0 0
    %540 = vmatpush1.bf16.msra.mxu0 0
    %541 = vmatprep.subr.bf16.mxu0 0
    %542 = vmatpush1.bf16.msra.mxu0 0
    %543 = vmatprep.subr.bf16.mxu0 0
    %544 = vmatpush1.bf16.msra.mxu0 0
    %545 = vmatprep.subr.bf16.mxu0 0
    %546 = vmatpush1.bf16.msra.mxu0 0
    %547 = vmatprep.subr.bf16.mxu0 0
    %548 = vmatpush1.bf16.msra.mxu0 0
    %549 = vmatprep.subr.bf16.mxu0 0
    %550 = vmatpush1.bf16.msra.mxu0 0
    %551 = vmatprep.subr.bf16.mxu0 0
    %552 = vmatpush1.bf16.msra.mxu0 0
    %553 = vmatprep.mubr.bf16.mxu0 0
    %554 = vmatmul.mubr.bf16.gmra.mrb[0].mxu0 %v519
    %v555 = vpop.f32.mrb[0].mxu0
    %v556 = vadd.f32 0.0, %v555
    %v557 = vpop.f32.mrb[0].mxu0
    %v558 = vpop.f32.mrb[0].mxu0
    %v559 = vpop.f32.mrb[0].mxu0
    %560 = vdwg.mxu0
    %v561 = vadd.f32 %v153, %v556
    %v562 = vmul.f32 %v561, 0.5
    %v563 = vtanh.pop %v562
    %v564 = vmul.f32 %v563, 0.5
    %v565 = vadd.f32 %v564, 0.5
    %v566 = vtanh.pop %v561
    %v567 = vmul.f32 %v565, %v507
    %569 = vrot.lane.b32.xlu0 %v566, 32
    %v570 = vpop.permute.xlu0 %569
    %v572 = vmul.f32 %v565, %v570
    %574 = vrot.lane.b32.xlu0 %v572, 32
    %v575 = vpop.permute.xlu0 %574
    %v577 = vadd.f32 %v567, %v575
    %v578 = vtanh.pop %v577
    %580 = vrot.lane.b32.xlu0 %v578, 32
    %v581 = vpop.permute.xlu0 %580
    %v583 = vmul.f32 %v565, %v581
    %v584 = vpack.c.bf16 %v583, %v583
    %586 = vrot.lane.b32.xlu0 %v584, 64
    %v587 = vpop.permute.xlu0 %586
    %v589 = vsel %vm167, %v587, 0
    %591 = vmatprep.subr.bf16.mxu0 0
    %592 = vmatpush1.bf16.msra.mxu0 %v163
    %593 = vmatprep.subr.bf16.mxu0 0
    %594 = vmatpush1.bf16.msra.mxu0 %v164
    %595 = vmatprep.subr.bf16.mxu0 0
    %596 = vmatpush1.bf16.msra.mxu0 0
    %597 = vmatprep.subr.bf16.mxu0 0
    %598 = vmatpush1.bf16.msra.mxu0 0
    %599 = vmatprep.subr.bf16.mxu0 0
    %600 = vmatpush1.bf16.msra.mxu0 0
    %601 = vmatprep.subr.bf16.mxu0 0
    %602 = vmatpush1.bf16.msra.mxu0 0
    %603 = vmatprep.subr.bf16.mxu0 0
    %604 = vmatpush1.bf16.msra.mxu0 0
    %605 = vmatprep.subr.bf16.mxu0 0
    %606 = vmatpush1.bf16.msra.mxu0 0
    %607 = vmatprep.subr.bf16.mxu0 0
    %608 = vmatpush1.bf16.msra.mxu0 0
    %609 = vmatprep.subr.bf16.mxu0 0
    %610 = vmatpush1.bf16.msra.mxu0 0
    %611 = vmatprep.subr.bf16.mxu0 0
    %612 = vmatpush1.bf16.msra.mxu0 0
    %613 = vmatprep.subr.bf16.mxu0 0
    %614 = vmatpush1.bf16.msra.mxu0 0
    %615 = vmatprep.subr.bf16.mxu0 0
    %616 = vmatpush1.bf16.msra.mxu0 0
    %617 = vmatprep.subr.bf16.mxu0 0
    %618 = vmatpush1.bf16.msra.mxu0 0
    %619 = vmatprep.subr.bf16.mxu0 0
    %620 = vmatpush1.bf16.msra.mxu0 0
    %621 = vmatprep.subr.bf16.mxu0 0
    %622 = vmatpush1.bf16.msra.mxu0 0
    %623 = vmatprep.mubr.bf16.mxu0 0
    %624 = vmatmul.mubr.bf16.gmra.mrb[0].mxu0 %v589
    %v625 = vpop.f32.mrb[0].mxu0
    %v626 = vadd.f32 0.0, %v625
    %v627 = vpop.f32.mrb[0].mxu0
    %v628 = vpop.f32.mrb[0].mxu0
    %v629 = vpop.f32.mrb[0].mxu0
    %630 = vdwg.mxu0
    %v631 = vadd.f32 %v150, %v626
    %v632 = vmul.f32 %v631, 0.5
    %v633 = vtanh.pop %v632
    %v634 = vmul.f32 %v633, 0.5
    %v635 = vadd.f32 %v634, 0.5
    %v636 = vtanh.pop %v631
    %v637 = vmul.f32 %v635, %v577
    %639 = vrot.lane.b32.xlu0 %v636, 32
    %v640 = vpop.permute.xlu0 %639
    %v642 = vmul.f32 %v635, %v640
    %644 = vrot.lane.b32.xlu0 %v642, 32
    %v645 = vpop.permute.xlu0 %644
    %v647 = vadd.f32 %v637, %v645
    %v648 = vtanh.pop %v647
    %650 = vrot.lane.b32.xlu0 %v648, 32
    %v651 = vpop.permute.xlu0 %650
    %v653 = vmul.f32 %v635, %v651
    %v654 = vpack.c.bf16 %v653, %v653
    %656 = vrot.lane.b32.xlu0 %v654, 64
    %v657 = vpop.permute.xlu0 %656
    %v659 = vsel %vm167, %v657, 0
    %661 = vmatprep.subr.bf16.mxu0 0
    %662 = vmatpush1.bf16.msra.mxu0 %v163
    %663 = vmatprep.subr.bf16.mxu0 0
    %664 = vmatpush1.bf16.msra.mxu0 %v164
    %665 = vmatprep.subr.bf16.mxu0 0
    %666 = vmatpush1.bf16.msra.mxu0 0
    %667 = vmatprep.subr.bf16.mxu0 0
    %668 = vmatpush1.bf16.msra.mxu0 0
    %669 = vmatprep.subr.bf16.mxu0 0
    %670 = vmatpush1.bf16.msra.mxu0 0
    %671 = vmatprep.subr.bf16.mxu0 0
    %672 = vmatpush1.bf16.msra.mxu0 0
    %673 = vmatprep.subr.bf16.mxu0 0
    %674 = vmatpush1.bf16.msra.mxu0 0
    %675 = vmatprep.subr.bf16.mxu0 0
    %676 = vmatpush1.bf16.msra.mxu0 0
    %677 = vmatprep.subr.bf16.mxu0 0
    %678 = vmatpush1.bf16.msra.mxu0 0
    %679 = vmatprep.subr.bf16.mxu0 0
    %680 = vmatpush1.bf16.msra.mxu0 0
    %681 = vmatprep.subr.bf16.mxu0 0
    %682 = vmatpush1.bf16.msra.mxu0 0
    %683 = vmatprep.subr.bf16.mxu0 0
    %684 = vmatpush1.bf16.msra.mxu0 0
    %685 = vmatprep.subr.bf16.mxu0 0
    %686 = vmatpush1.bf16.msra.mxu0 0
    %687 = vmatprep.subr.bf16.mxu0 0
    %688 = vmatpush1.bf16.msra.mxu0 0
    %689 = vmatprep.subr.bf16.mxu0 0
    %690 = vmatpush1.bf16.msra.mxu0 0
    %691 = vmatprep.subr.bf16.mxu0 0
    %692 = vmatpush1.bf16.msra.mxu0 0
    %693 = vmatprep.mubr.bf16.mxu0 0
    %694 = vmatmul.mubr.bf16.gmra.mrb[0].mxu0 %v659
    %v695 = vpop.f32.mrb[0].mxu0
    %v696 = vadd.f32 0.0, %v695
    %v697 = vpop.f32.mrb[0].mxu0
    %v698 = vpop.f32.mrb[0].mxu0
    %v699 = vpop.f32.mrb[0].mxu0
    %700 = vdwg.mxu0
    %v701 = vadd.f32 %v154, %v696
    %v702 = vmul.f32 %v701, 0.5
    %v703 = vtanh.pop %v702
    %v704 = vmul.f32 %v703, 0.5
    %v705 = vadd.f32 %v704, 0.5
    %v706 = vtanh.pop %v701
    %v707 = vmul.f32 %v705, %v647
    %709 = vrot.lane.b32.xlu0 %v706, 32
    %v710 = vpop.permute.xlu0 %709
    %v712 = vmul.f32 %v705, %v710
    %714 = vrot.lane.b32.xlu0 %v712, 32
    %v715 = vpop.permute.xlu0 %714
    %v717 = vadd.f32 %v707, %v715
    %v718 = vtanh.pop %v717
    %720 = vrot.lane.b32.xlu0 %v718, 32
    %v721 = vpop.permute.xlu0 %720
    %v723 = vmul.f32 %v705, %v721
    %v724 = vpack.c.bf16 %v723, %v723
    %v725 = vld [vmem:[%s4] sm:$0xf]
    %v726 = vld [vmem:[%s4 + $0x4] sm:$0xf]
    %v727 = vld [vmem:[%s4 + $0x8] sm:$0xf]
    %v728 = vld [vmem:[%s4 + $0xc] sm:$0xf]
    %v729 = vld [vmem:[%s5] sm:$0x1]
    %v731 = vlaneseq
    %v732 = vshrl.u32 %v731, 7
    %v733 = vsub.s32 0, %v732
    %v734 = vrot.slane %v729, %v733
    %737 = vrot.lane.b32.xlu0 %v724, 64
    %v738 = vpop.permute.xlu0 %737
    %v743 = vunpack.c.l.b16 %v725
    %v744 = vunpack.c.l.b16 %v726
    %v745 = vunpack.c.l.b16 %v727
    %v746 = vunpack.c.l.b16 %v728
    %v747 = vpack.c.b16 %v744, %v743
    %v748 = vpack.c.b16 %v746, %v745
    %v752 = vsel %vm167, %v738, 0
    %754 = vmatprep.subr.bf16.mxu0 0
    %755 = vmatpush1.bf16.msra.mxu0 %v747
    %756 = vmatprep.subr.bf16.mxu0 0
    %757 = vmatpush1.bf16.msra.mxu0 %v748
    %758 = vmatprep.subr.bf16.mxu0 0
    %759 = vmatpush1.bf16.msra.mxu0 0
    %760 = vmatprep.subr.bf16.mxu0 0
    %761 = vmatpush1.bf16.msra.mxu0 0
    %762 = vmatprep.subr.bf16.mxu0 0
    %763 = vmatpush1.bf16.msra.mxu0 0
    %764 = vmatprep.subr.bf16.mxu0 0
    %765 = vmatpush1.bf16.msra.mxu0 0
    %766 = vmatprep.subr.bf16.mxu0 0
    %767 = vmatpush1.bf16.msra.mxu0 0
    %768 = vmatprep.subr.bf16.mxu0 0
    %769 = vmatpush1.bf16.msra.mxu0 0
    %770 = vmatprep.subr.bf16.mxu0 0
    %771 = vmatpush1.bf16.msra.mxu0 0
    %772 = vmatprep.subr.bf16.mxu0 0
    %773 = vmatpush1.bf16.msra.mxu0 0
    %774 = vmatprep.subr.bf16.mxu0 0
    %775 = vmatpush1.bf16.msra.mxu0 0
    %776 = vmatprep.subr.bf16.mxu0 0
    %777 = vmatpush1.bf16.msra.mxu0 0
    %778 = vmatprep.subr.bf16.mxu0 0
    %779 = vmatpush1.bf16.msra.mxu0 0
    %780 = vmatprep.subr.bf16.mxu0 0
    %781 = vmatpush1.bf16.msra.mxu0 0
    %782 = vmatprep.subr.bf16.mxu0 0
    %783 = vmatpush1.bf16.msra.mxu0 0
    %784 = vmatprep.subr.bf16.mxu0 0
    %785 = vmatpush1.bf16.msra.mxu0 0
    %786 = vmatprep.mubr.bf16.mxu0 0
    %787 = vmatmul.mubr.bf16.gmra.mrb[0].mxu0 %v752
    %v788 = vpop.f32.mrb[0].mxu0
    %v789 = vadd.f32 %v734, %v788
    %v790 = vpop.f32.mrb[0].mxu0
    %v791 = vpop.f32.mrb[0].mxu0
    %v792 = vpop.f32.mrb[0].mxu0
    %793 = vdwg.mxu0
    %vm794 = vcmask 25600
    %795 = vst.msk [vmem:[#allocation2] sm:$0x3] %vm794, %v789
    // Predicated region
    $region26: #{lstm_model_forward.1} parent=1 // pred_check
      _
    $region27: #{lstm_model_forward.1} parent=1 // pred_check_branch
      %797 = sbr.rel (0) target = $region29
    $region28: #{lstm_model_forward.1} parent=1 // pred_region
      %s799 = ssub.s32 32, 32
      %800 = vsyncadd [#allocation3], %s799
      %s802 = sshll.u32 [#allocation2], 4
      %s803 = int_to_ptr.vmem [resolvable:$true] %s802
      %805 = dma.vmem_to_hbm [thread:$0]  %s803, 32, %s6, [#allocation3]
    $region29: #{lstm_model_forward.1} parent=1 // pred_fallthru
      _
    // Predicated region
    $region30: #{lstm_model_forward.1} parent=1 // pred_check
      _
    $region31: #{lstm_model_forward.1} parent=1 // pred_check_branch
      %807 = sbr.rel (0) target = $region33
    $region32: #{lstm_model_forward.1} parent=1 // pred_region
      %808 = dma.done [#allocation3], 32
    $region33: #{lstm_model_forward.1} parent=1 // pred_fallthru
      _
    %809 = vsyncpa [#allocation3], 1

</llo_original>
